<compile_context>
chip_gen: v7x
topology: tpu7x:2x2x1
jax: 0.10.0
libtpu: 0.0.40
codegen_flags: <defaults>
</compile_context>

<pallas_src>
import functools

import jax
import jax.numpy as jnp
from jax import lax
from jax.experimental import pallas as pl
from jax.experimental.pallas import tpu as pltpu


def _cdiv(a, b):
    return -(-a // b)


def _round_down(a, m):
    return (a // m) * m


def _tpu_vmem_capacity_bytes(default=64 * 1024 * 1024):
    """Physical VMEM bytes of the local TPU; conservative default if unknown."""
    try:
        info = pltpu.get_tpu_info()
        for name in ("vmem_capacity_bytes", "vmem_size_bytes", "vmem_bytes"):
            v = getattr(info, name, None)
            if v is not None and int(v) > 0:
                return int(v)
    except Exception:
        pass
    return default


def _num_tensorcores():
    """2 on chips whose TensorCores can be fed via a 'parallel' grid axis."""
    try:
        kind = jax.devices()[0].device_kind.lower()
        if any(tag in kind for tag in ("v7", "tpu7", "v4", "v5p")):
            return 2
    except Exception:
        pass
    return 1


def _entropy_counts_kernel(x_ref, o_ref, acc_ref, *,
                           steps, tn, ch, n_valid_rows, any_mask):
    """Accumulates per-column nonzero counts for one (core, column-chunk)."""
    c = pl.program_id(0)           # core (row-half) index
    n = pl.program_id(2)           # row-step index (innermost, reduction)
    td = x_ref.shape[1]
    n_inner = tn // ch

    @pl.when(n == 0)
    def _init():
        acc_ref[...] = jnp.zeros_like(acc_ref)

    # Global (unclamped) first row covered by this block.  Padding blocks of
    # the last core land past n_valid_rows and are fully masked below.
    block_start = (c * steps + n) * tn

    def _accum(masked):
        def body(i, carry):
            base = pl.multiple_of(i * ch, ch)
            m = (x_ref[pl.ds(base, ch), :] != 0).astype(jnp.int32)   # (ch, td)
            if masked:
                # Narrow (ch, 1) validity iota; broadcast inside the where.
                row = (lax.broadcasted_iota(jnp.int32, (ch, 1), 0)
                       + block_start + base)
                m = jnp.where(row < n_valid_rows, m, 0)
            # Sublane-aligned fold into the (8, td) accumulator: VALU adds only.
            acc_ref[...] += jnp.sum(m.reshape(ch // 8, 8, td), axis=0)
            return carry
        lax.fori_loop(0, n_inner, body, 0)

    if any_mask:
        needs_mask = block_start + tn > n_valid_rows

        @pl.when(jnp.logical_not(needs_mask))
        def _fast():                       # interior blocks: no mask cost
            _accum(masked=False)

        @pl.when(needs_mask)
        def _edge():                       # only the ragged / padding blocks
            _accum(masked=True)
    else:
        _accum(masked=False)

    @pl.when(n == steps - 1)
    def _finalize():
        # Single cross-sublane fold of the 8 accumulator rows per block column.
        o_ref[...] = jnp.sum(acc_ref[...], axis=0).reshape(o_ref.shape)


def entropy_loss_pallas(x: jax.Array, coe) -> jax.Array:
    """Entropy loss over nonzero-usage of each embedding dimension.

    Args:
      x:   (N, D) array (any dtype where `!= 0` is meaningful).
      coe: scalar coefficient.
    Returns:
      scalar float32 loss.
    """
    if x.ndim != 2:
        raise ValueError("expected a 2-D (batch, embedding_dim) input")
    N, D = x.shape
    itemsize = jnp.dtype(x.dtype).itemsize
    sub = max(8, 32 // itemsize)             # sublane multiple for this dtype

    # ---- 1) Lane packing for narrow embedding dims (D < 128). -------------
    k = 1
    if D < 128:
        k = max(1, min(128 // D, N // sub))
    n_main = (N // k) * k
    x_tail = x[n_main:] if n_main < N else None          # <k leftover rows
    x_k = x[:n_main].reshape(n_main // k, k * D) if k > 1 else x
    d_eff = k * D
    n_pk = x_k.shape[0]

    # Tiny batches: zero-pad rows to one sublane group (zero rows add 0 counts).
    if n_pk < sub:
        x_k = jnp.pad(x_k, ((0, sub - n_pk), (0, 0)))
        n_pk = sub

    # ---- 2) Column chunking for very wide embedding dims. -----------------
    TD_MAX = 4096                                   # lanes per block (128-mult)
    if d_eff <= TD_MAX:
        td, n_dcols = d_eff, 1
    else:
        td, n_dcols = TD_MAX, _cdiv(d_eff, TD_MAX)

    # ---- 3) Inner compute chunk: ~32 vregs of live intermediates. ---------
    ch = max(sub, min(512, _round_down(max(sub, 32768 // td), sub)))
    ch = min(ch, _round_down(n_pk, sub))

    # ---- 4) Row tile (DMA block) sized from the chip's VMEM capacity. -----
    vmem_cap = _tpu_vmem_capacity_bytes()
    if vmem_cap >= 96 * 2**20:                      # v5e / v6e: 128 MiB VMEM
        tile_budget, vmem_limit = 24 * 2**20, 56 * 2**20
    else:                                           # v7x (64 MiB) or unknown
        tile_budget, vmem_limit = 20 * 2**20, 48 * 2**20
    rows_budget = max(ch, int(tile_budget // (td * itemsize)))
    tn = max(ch, _round_down(rows_budget, ch))
    tn = min(tn, max(ch, _round_down(n_pk, ch)))    # never exceed the array

    # ---- 5) Grid: (cores, column chunks, row steps). -----------------------
    total_row_blocks = _cdiv(n_pk, tn)
    n_cores = _num_tensorcores() if total_row_blocks > 1 else 1
    n_cores = min(n_cores, total_row_blocks)
    steps = _cdiv(total_row_blocks, n_cores)
    any_mask = (n_cores * steps * tn) > n_pk
    last_rb = total_row_blocks - 1

    def x_index_map(c, d, n):
        # Clamp padding blocks of the last core onto the final valid block;
        # their rows are masked to zero inside the kernel.
        return (jnp.minimum(c * steps + n, last_rb), d)

    kernel = functools.partial(
        _entropy_counts_kernel,
        steps=steps, tn=tn, ch=ch, n_valid_rows=n_pk, any_mask=any_mask)

    counts3 = pl.pallas_call(
        kernel,
        out_shape=jax.ShapeDtypeStruct((n_cores, 1, d_eff), jnp.int32),
        grid_spec=pltpu.PrefetchScalarGridSpec(
            num_scalar_prefetch=0,
            grid=(n_cores, n_dcols, steps),
            in_specs=[pl.BlockSpec((tn, td), x_index_map)],
            out_specs=pl.BlockSpec((1, 1, td), lambda c, d, n: (c, 0, d)),
            scratch_shapes=[pltpu.VMEM((8, td), jnp.int32)],
        ),
        compiler_params=pltpu.CompilerParams(
            dimension_semantics=("parallel", "arbitrary", "arbitrary"),
            vmem_limit_bytes=vmem_limit,
        ),
    )(x_k)

    # ---- 6) Tiny JAX epilogue: fold cores / lane replicas / tail, entropy. -
    counts = jnp.sum(counts3, axis=(0, 1))                     # (d_eff,) int32
    if k > 1:
        counts = jnp.sum(counts.reshape(k, D), axis=0)         # fold packing
    counts = counts.astype(jnp.float32)
    if x_tail is not None and x_tail.shape[0] > 0:
        counts = counts + jnp.sum((x_tail != 0).astype(jnp.float32), axis=0)
    p = counts / jnp.float32(N)
    # Columns never used are skipped by the PyTorch loop: p=1 gives a 0 term.
    p_safe = jnp.where(counts > 0.0, p, jnp.float32(1.0))
    # coe applied outside the kernel: runtime changes never trigger recompiles.
    return jnp.float32(coe) * jnp.sum(-p_safe * jnp.log(p_safe))


def entropy_loss_ref(x: jax.Array, coe) -> jax.Array:
    """Pure-JAX reference mirroring the PyTorch loop semantics."""
    n = jnp.float32(x.shape[0])
    counts = jnp.sum((x != 0).astype(jnp.float32), axis=0)
    p = counts / n
    p_safe = jnp.where(counts > 0, p, 1.0)
    return jnp.float32(coe) * jnp.sum(-p_safe * jnp.log(p_safe))


if __name__ == "__main__":
    key = jax.random.PRNGKey(0)
    coe = 0.1
    k1, k2, k3, k4 = jax.random.split(key, 4)

    def sparse(rng, shape, thresh, dead_col):
        v = jax.random.normal(rng, shape, dtype=jnp.float32)
        v = jnp.where(jnp.abs(v) < thresh, 0.0, v)      # sparse activations
        return v.at[:, dead_col].set(0.0)               # fully-dead dim

    cases = [
        sparse(k1, (8, 32), 0.7, 5),       # module-typical: batch=8, dim=32
        sparse(k2, (300, 16), 0.5, 3),     # lane packing (k=8) + tail + ragged mask
        sparse(k3, (200, 512), 0.5, 100),  # multi row-block + inner fori_loop
        sparse(k4, (64, 4224), 0.5, 4100), # column-chunked wide embedding
    ]
    for i, xi in enumerate(cases):
        got = jax.block_until_ready(entropy_loss_pallas(xi, coe))
        want = jax.block_until_ready(entropy_loss_ref(xi, coe))
        assert jnp.allclose(got, want, rtol=1e-5, atol=1e-6), (i, got, want)

    print("KERNEL_OK")
</pallas_src>

<mosaic_0001>
module attributes {stable_mosaic.version = 11 : i64} {
  func.func @_entropy_counts_kernel(%arg0: i32, %arg1: i32, %arg2: i32, %arg3: memref<8x32xf32, #tpu.memory_space<vmem>>, %arg4: memref<1x1x32xi32, #tpu.memory_space<vmem>>, %arg5: memref<8x32xi32, #tpu.memory_space<vmem>>) attributes {dimension_semantics = [#tpu.dimension_semantics<parallel>, #tpu.dimension_semantics<arbitrary>, #tpu.dimension_semantics<arbitrary>], iteration_bounds = array<i64: 1, 1, 1>, scalar_prefetch = 0 : i64, scratch_operands = 1 : i64, tpu.core_type = #tpu.core_type<tc>, window_params = [{transform_indices = @transform_0, window_bounds = array<i64: 8, 32>}, {transform_indices = @transform_1, window_bounds = array<i64: 1, 1, 32>}]} {
    %c0_i32 = arith.constant 0 : i32
    %0 = arith.cmpi eq, %arg2, %c0_i32 : i32
    %1 = arith.extui %0 : i1 to i32
    %c0_i32_0 = arith.constant 0 : i32
    %2 = arith.cmpi ne, %1, %c0_i32_0 : i32
    scf.if %2 {
      %c0_i32_9 = arith.constant 0 : i32
      %18 = vector.broadcast %c0_i32_9 : i32 to vector<8x32xi32>
      %c0_10 = arith.constant 0 : index
      %c0_11 = arith.constant 0 : index
      %19 = vector.load %arg5[%c0_10, %c0_11] : memref<8x32xi32, #tpu.memory_space<vmem>>, vector<8x32xi32>
      tpu.vector_store %arg5[%c0_10, %c0_11], %18 {strides = array<i32>} : memref<8x32xi32, #tpu.memory_space<vmem>>, vector<8x32xi32>,
    } else {
    }
    %c0_i32_1 = arith.constant 0 : i32
    %c8_i32 = arith.constant 8 : i32
    %3 = arith.muli %c0_i32_1, %c8_i32 : i32
    %4 = tpu.assume_multiple %3, 8 : i32
    %5 = arith.index_cast %4 : i32 to index
    %c0 = arith.constant 0 : index
    %6 = vector.load %arg3[%5, %c0] : memref<8x32xf32, #tpu.memory_space<vmem>>, vector<8x32xf32>
    %cst = arith.constant 0.000000e+00 : f32
    %7 = vector.broadcast %cst : f32 to vector<8x32xf32>
    %8 = arith.cmpf one, %6, %7 : vector<8x32xf32>
    %9 = arith.extui %8 : vector<8x32xi1> to vector<8x32xi32>
    %c0_2 = arith.constant 0 : index
    %c0_3 = arith.constant 0 : index
    %10 = vector.load %arg5[%c0_2, %c0_3] : memref<8x32xi32, #tpu.memory_space<vmem>>, vector<8x32xi32>
    %11 = vector.shape_cast %9 : vector<8x32xi32> to vector<1x8x32xi32>
    %cst_4 = arith.constant dense<0> : vector<8x32xi32>
    %12 = vector.multi_reduction <add>, %11, %cst_4 [0] : vector<1x8x32xi32> to vector<8x32xi32>
    %13 = arith.addi %10, %12 : vector<8x32xi32>
    %c0_5 = arith.constant 0 : index
    %c0_6 = arith.constant 0 : index
    %14 = vector.load %arg5[%c0_5, %c0_6] : memref<8x32xi32, #tpu.memory_space<vmem>>, vector<8x32xi32>
    tpu.vector_store %arg5[%c0_5, %c0_6], %13 {strides = array<i32>} : memref<8x32xi32, #tpu.memory_space<vmem>>, vector<8x32xi32>,
    %c1_i32 = arith.constant 1 : i32
    %c0_i32_7 = arith.constant 0 : i32
    %15 = arith.cmpi eq, %arg2, %c0_i32_7 : i32
    %16 = arith.extui %15 : i1 to i32
    %c0_i32_8 = arith.constant 0 : i32
    %17 = arith.cmpi ne, %16, %c0_i32_8 : i32
    scf.if %17 {
      %c0_9 = arith.constant 0 : index
      %c0_10 = arith.constant 0 : index
      %18 = vector.load %arg5[%c0_9, %c0_10] : memref<8x32xi32, #tpu.memory_space<vmem>>, vector<8x32xi32>
      %cst_11 = arith.constant dense<0> : vector<32xi32>
      %19 = vector.multi_reduction <add>, %18, %cst_11 [0] : vector<8x32xi32> to vector<32xi32>
      %20 = vector.shape_cast %19 : vector<32xi32> to vector<1x1x32xi32>
      %c0_12 = arith.constant 0 : index
      %c0_13 = arith.constant 0 : index
      %c0_14 = arith.constant 0 : index
      %21 = vector.load %arg4[%c0_12, %c0_13, %c0_14] : memref<1x1x32xi32, #tpu.memory_space<vmem>>, vector<1x1x32xi32>
      tpu.vector_store %arg4[%c0_12, %c0_13, %c0_14], %20 {strides = array<i32>} : memref<1x1x32xi32, #tpu.memory_space<vmem>>, vector<1x1x32xi32>,
    } else {
    }
    return
  }
  func.func @transform_0(%arg0: i32, %arg1: i32, %arg2: i32) -> (i32, i32) {
    %c1_i32 = arith.constant 1 : i32
    %0 = arith.muli %arg0, %c1_i32 : i32
    %1 = arith.addi %0, %arg2 : i32
    %c0_i32 = arith.constant 0 : i32
    %2 = arith.minsi %1, %c0_i32 : i32
    %c0_i32_0 = arith.constant 0 : i32
    return %2, %arg1 : i32, i32
  }
  func.func @transform_1(%arg0: i32, %arg1: i32, %arg2: i32) -> (i32, i32, i32) {
    %c0_i32 = arith.constant 0 : i32
    %c0_i32_0 = arith.constant 0 : i32
    return %arg0, %c0_i32, %arg1 : i32, i32, i32
  }
}

</mosaic_0001>

<llo_original>
// kernel: tpu_custom_call.1
$region0: #{tpu_custom_call.1}
  #allocation0 [shape = 'u32[]', space=smem, size = 0x4, offset = 0x4, fixed_abs, tag = 'smem constant byte address 0x4 - core index']
  #allocation1 [shape = 'u32[144,128]{1,0:T(1,128)}', space=vmem, size = 0x12000, scoped, tag = 'internal scratch']
  #allocation2 [shape = 's32[8,32]{1,0:T(8,128)}', space=vmem, size = 0x1000, scoped, tag = 'scratch operand']
  %s0 = inlined_call_operand.hbm [shape: f32[8,32], index: 0, kind: input, shape index: {}]
  %s1 = inlined_call_operand.hbm [shape: s32[1,1,32], index: 1, kind: output, shape index: {}]
  %s2 = sld [smem:[#allocation0]]
  $region26: #{tpu_custom_call.1} parent=0
    _
  %s4 = ssub.s32 1, %s2
  %s5 = scalar_select 0, %s4, %s2
  $region1: #{tpu_custom_call.1} parent=0
    #allocation3 [shape = 'u8[4096]{0}', space=vmem, size = 0x1000, scoped, tag = 'input window, operand 0, single buffered']
    #allocation4 [shape = 's32[1]{0}', space=sflag, size = 0x4, scoped, tag = 'scoped memory for tpu_custom_call.1']
    #allocation5 [shape = 's32[1]{0}', space=sflag, size = 0x4, scoped, tag = 'scoped memory for tpu_custom_call.1']
    #allocation6 [shape = 'u8[512]{0}', space=vmem, size = 0x400, scoped, tag = 'output window, operand 0, single buffered']
    %6 = vsyncpa [#allocation4], 0
    %7 = vsyncpa [#allocation5], 0
    // Predicated region
    $region2: #{tpu_custom_call.1} parent=1 // pred_check
      _
    $region3: #{tpu_custom_call.1} parent=1 // pred_check_branch
      %9 = sbr.rel (0) target = $region5
    $region4: #{tpu_custom_call.1} parent=1 // pred_region
      %s10 = sadd.s32 0, 0
      %p11 = scmp.lt.s32.totalorder %s10, 0
      %s12 = scalar_select %p11, %s10, 0
      %s14 = ssub.s32 128, 128
      %15 = vsyncadd [#allocation4], %s14
      %s16 = smul.addr %s12, 128
      %s17 = scalar_lea.hbm %s0, %s16
      %s19 = sshll.u32 [#allocation3], 4
      %s20 = int_to_ptr.vmem [resolvable:$true] %s19
      %22 = dma.hbm_to_vmem [thread:$0]  %s17, 128, %s20, [#allocation4]
    $region5: #{tpu_custom_call.1} parent=1 // pred_fallthru
      _
    // Predicated region
    $region6: #{tpu_custom_call.1} parent=1 // pred_check
      _
    $region7: #{tpu_custom_call.1} parent=1 // pred_check_branch
      %24 = sbr.rel (0) target = $region9
    $region8: #{tpu_custom_call.1} parent=1 // pred_region
      %25 = dma.done [#allocation4], 128
    $region9: #{tpu_custom_call.1} parent=1 // pred_fallthru
      _
    %s26 = sadd.s32 0, 0
    %p27 = scmp.lt.s32.totalorder %s26, 0
    %s28 = scalar_select %p27, %s26, 0
    %p29 = scmp.eq.s32.totalorder 0, 0
    // Predicated region
    $region10: #{tpu_custom_call.1} parent=1 // pred_check
      %p30 = pneg %p29
    $region11: #{tpu_custom_call.1} parent=1 // pred_check_branch
      %32 = sbr.rel (%p30) target = $region13
    $region12: #{tpu_custom_call.1} parent=1 // pred_region
      %vm33 = vcmask 261120
      %34 = vst.msk [vmem:[#allocation2] sm:$0xff] %vm33, 0
    $region13: #{tpu_custom_call.1} parent=1 // pred_fallthru
      _
    %v35 = vld [vmem:[#allocation3] sm:$0xff]
    %vm36 = vcmp.ne.f32.partialorder %v35, 0.0
    %v37 = vsel %vm36, 1, 0
    %v38 = vld [vmem:[#allocation2] sm:$0xff]
    %v39 = vadd.s32 %v38, %v37
    %vm40 = vcmask 261120
    %41 = vst.msk [vmem:[#allocation2] sm:$0xff] %vm40, %v39
    // Predicated region
    $region14: #{tpu_custom_call.1} parent=1 // pred_check
      %p42 = pneg %p29
    $region15: #{tpu_custom_call.1} parent=1 // pred_check_branch
      %44 = sbr.rel (%p42) target = $region17
    $region16: #{tpu_custom_call.1} parent=1 // pred_region
      %v45 = vld [vmem:[#allocation2] sm:$0xff]
      %v46 = vsel %vm40, %v45, 0
      %v47 = vrot.slane %v46, 4
      %v48 = vadd.s32 %v46, %v47
      %v49 = vrot.slane %v48, 2
      %v50 = vadd.s32 %v48, %v49
      %v51 = vrot.slane %v50, 1
      %v52 = vadd.s32 %v50, %v51
      %vm53 = vcmask 253952
      %54 = vst.msk [vmem:[#allocation6] sm:$0x1] %vm53, %v52
    $region17: #{tpu_custom_call.1} parent=1 // pred_fallthru
      _
    // Predicated region
    $region18: #{tpu_custom_call.1} parent=1 // pred_check
      _
    $region19: #{tpu_custom_call.1} parent=1 // pred_check_branch
      %56 = sbr.rel (0) target = $region21
    $region20: #{tpu_custom_call.1} parent=1 // pred_region
      %s58 = ssub.s32 16, 16
      %59 = vsyncadd [#allocation5], %s58
      %s61 = sshll.u32 [#allocation6], 4
      %s62 = int_to_ptr.vmem [resolvable:$true] %s61
      %64 = dma.vmem_to_hbm [thread:$0]  %s62, 16, %s1, [#allocation5]
    $region21: #{tpu_custom_call.1} parent=1 // pred_fallthru
      _
    // Predicated region
    $region22: #{tpu_custom_call.1} parent=1 // pred_check
      _
    $region23: #{tpu_custom_call.1} parent=1 // pred_check_branch
      %66 = sbr.rel (0) target = $region25
    $region24: #{tpu_custom_call.1} parent=1 // pred_region
      %67 = dma.done [#allocation5], 16
    $region25: #{tpu_custom_call.1} parent=1 // pred_fallthru
      _
    %68 = vsyncpa [#allocation4], 1
    %69 = vsyncpa [#allocation5], 1

</llo_original>
